<compile_context>
chip_gen: v7x
topology: tpu7x:2x2x1
jax: 0.10.0
libtpu: 0.0.40
codegen_flags: <defaults>
</compile_context>

<pallas_src>
import functools

import jax
import jax.numpy as jnp
from jax.experimental import pallas as pl
from jax.experimental.pallas import tpu as pltpu


def _round_up(x, m):
    return ((x + m - 1) // m) * m


# ----------------------------- Pallas kernels ------------------------------

def _identity_kernel(x_ref, o_ref):
    # forward(x) == x
    o_ref[...] = x_ref[...]


def _energy_kernel(zl_ref, zr_ref, bl_ref, br_ref, w_ref, e_ref):
    """One row-tile of E(z).

    zl/zr : (TILE_N, H) bf16   -- split halves of z (0/1 values, exact in bf16)
    bl/br : (1, H)      f32    -- bias rows (split halves of b^T)
    w     : (H, H)      bf16   -- coupling matrix (VMEM-resident across grid)
    e     : (TILE_N, 1) f32    -- per-row energy
    """
    # Single MXU matmul, f32 accumulation.
    zlw = jnp.dot(zl_ref[...], w_ref[...],
                  preferred_element_type=jnp.float32)          # (T, H) f32
    # Element-wise path in f32 (VPU); bias matvec fused here (2 mul + 2 add).
    zl = zl_ref[...].astype(jnp.float32)
    zr = zr_ref[...].astype(jnp.float32)
    t = zl * bl_ref[...] + zr * (br_ref[...] + zlw)            # (T, H) f32
    # Single XLU lane reduction.
    e_ref[...] = -jnp.sum(t, axis=1, keepdims=True)            # (T, 1)


# ----------------------------- wrappers -------------------------------------

@functools.partial(jax.jit, static_argnames=("tile_rows",))
def rbm_forward(x, tile_rows=1024):
    """Identity forward pass through a (row-tiled) Pallas copy kernel."""
    orig_shape = x.shape
    x2 = x.reshape(1, -1) if x.ndim == 1 else x.reshape(-1, orig_shape[-1])
    n, m = x2.shape
    # Tile only when it divides cleanly; otherwise a single full block
    # (block == full array dims, so the (8,128) constraint does not apply).
    tile = tile_rows if (n >= tile_rows and n % tile_rows == 0) else n
    y2 = pl.pallas_call(
        _identity_kernel,
        out_shape=jax.ShapeDtypeStruct((n, m), x2.dtype),
        grid=(n // tile,),
        in_specs=[pl.BlockSpec((tile, m), lambda i: (i, 0))],
        out_specs=pl.BlockSpec((tile, m), lambda i: (i, 0)),
        compiler_params=pltpu.CompilerParams(
            dimension_semantics=("parallel",)),
    )(x2)
    return y2.reshape(orig_shape)


@functools.partial(jax.jit, static_argnames=("tile_n",))
def rbm_energy(z, b, W, tile_n=512):
    """energy(z) -> (N, 1) float32, matching torch semantics.

    E(z) = -( z @ b + sum((z_l @ W) * z_r, axis=1, keepdims=True) )
    """
    n, d = z.shape
    h = W.shape[0]
    assert d == 2 * h and b.shape == (d, 1)

    # Pre-split z at the JAX level (lane-aligned tiles; no in-vreg slicing) and
    # cast the MXU operands to bf16 (z is 0/1 -> exact; W loses a few bits).
    z_l = z[:, :h].astype(jnp.bfloat16)
    z_r = z[:, h:].astype(jnp.bfloat16)
    b_l = b[:h, 0].reshape(1, h).astype(jnp.float32)
    b_r = b[h:, 0].reshape(1, h).astype(jnp.float32)
    w_bf = W.astype(jnp.bfloat16)

    # Row tiling: multiple of 16 sublanes (bf16 packing); pad N with zero rows
    # (padding rows contribute zero energy and are sliced off below).
    tile = min(tile_n, _round_up(max(n, 1), 16))
    tile = _round_up(tile, 16)
    n_pad = _round_up(n, tile)
    if n_pad != n:
        pad = ((0, n_pad - n), (0, 0))
        z_l = jnp.pad(z_l, pad)
        z_r = jnp.pad(z_r, pad)

    e = pl.pallas_call(
        _energy_kernel,
        out_shape=jax.ShapeDtypeStruct((n_pad, 1), jnp.float32),
        grid=(n_pad // tile,),
        in_specs=[
            pl.BlockSpec((tile, h), lambda i: (i, 0)),   # z_l row tile
            pl.BlockSpec((tile, h), lambda i: (i, 0)),   # z_r row tile
            pl.BlockSpec((1, h), lambda i: (0, 0)),      # b_l (VMEM-resident)
            pl.BlockSpec((1, h), lambda i: (0, 0)),      # b_r (VMEM-resident)
            pl.BlockSpec((h, h), lambda i: (0, 0)),      # W   (VMEM-resident)
        ],
        out_specs=pl.BlockSpec((tile, 1), lambda i: (i, 0)),
        compiler_params=pltpu.CompilerParams(
            dimension_semantics=("parallel",),
            vmem_limit_bytes=48 * 1024 * 1024,           # headroom on v7x (64 MiB)
        ),
    )(z_l, z_r, b_l, b_r, w_bf)
    return e[:n]


class RBM:
    """JAX/Pallas port of the torch RBM's numerical pieces."""

    def __init__(self, latent_dim, num_fantasy_particles, key):
        self.latent_dim = latent_dim
        self.num_fantasy_particles = num_fantasy_particles
        k1, k2, k3 = jax.random.split(key, 3)
        # Module __init__ uses zeros; we use small deterministic random values
        # so the kernel computes something non-trivial (shapes identical).
        self.b = 0.01 * jax.random.normal(k1, (latent_dim, 1), jnp.float32)
        self.W = 0.01 * jax.random.normal(
            k2, (latent_dim // 2, latent_dim // 2), jnp.float32)
        self.pcd_state = jax.random.bernoulli(
            k3, 0.5, (num_fantasy_particles, latent_dim)).astype(jnp.float32)

    # forward(x) == x
    def forward(self, x):
        return rbm_forward(x)

    def energy(self, z):
        return rbm_energy(z, self.b, self.W)

    def positive_phase_energy(self, zeta):
        # torch: mean over dim=-1 of an (N, 1) tensor -> shape (N,)
        return jnp.mean(self.energy(zeta), axis=-1)

    def negative_phase_energy(self):
        return jnp.mean(self.energy(self.pcd_state))

    def log_prob(self, zeta):
        # Fused: one pallas_call evaluates both phases (b/W loaded into VMEM
        # once, single launch overhead).
        n_pos = zeta.shape[0]
        z_all = jnp.concatenate([zeta, self.pcd_state], axis=0)
        e_all = rbm_energy(z_all, self.b, self.W)
        pos = jnp.mean(e_all[:n_pos], axis=-1)   # (n_pos,)
        neg = jnp.mean(e_all[n_pos:])            # scalar
        return -(pos - neg)


# ----------------------------- reference (pure JAX) -------------------------

def _energy_ref(z, b, W):
    h = W.shape[0]
    z_l, z_r = z[:, :h], z[:, h:]
    return -(z @ b + jnp.sum((z_l @ W) * z_r, axis=1, keepdims=True))


# ----------------------------------------------------------------------------

if __name__ == "__main__":
    latent_dim = 32
    num_fantasy_particles = 16
    batch = 8

    key = jax.random.PRNGKey(0)
    k_model, k_zeta = jax.random.split(key)

    rbm = RBM(latent_dim, num_fantasy_particles, k_model)

    # zeta: latent samples, shape (batch, latent_dim), float32 (like torch).
    zeta = jax.random.bernoulli(
        k_zeta, 0.5, (batch, latent_dim)).astype(jnp.float32)

    # 1) forward pass (identity) via the tiled Pallas copy kernel
    y = rbm.forward(zeta)
    jax.block_until_ready(y)
    assert y.shape == zeta.shape and y.dtype == zeta.dtype
    assert bool(jnp.all(y == zeta))

    # 2) energy / log_prob via the Pallas energy kernel
    e = rbm.energy(zeta)
    lp = rbm.log_prob(zeta)
    jax.block_until_ready((e, lp))
    assert e.shape == (batch, 1)
    assert lp.shape == (batch,)

    # Checks: tight against a reference that applies the same bf16 cast to W
    # (z is 0/1 so its cast is exact); loose against the full-f32 reference.
    W_q = rbm.W.astype(jnp.bfloat16).astype(jnp.float32)
    e_ref_q = _energy_ref(zeta, rbm.b, W_q)
    e_ref_f = _energy_ref(zeta, rbm.b, rbm.W)
    assert bool(jnp.allclose(e, e_ref_q, atol=1e-5, rtol=1e-5))
    assert bool(jnp.allclose(e, e_ref_f, atol=2e-2, rtol=2e-2))

    ne_ref_q = jnp.mean(_energy_ref(rbm.pcd_state, rbm.b, W_q))
    lp_ref_q = -(jnp.mean(e_ref_q, axis=-1) - ne_ref_q)
    assert bool(jnp.allclose(lp, lp_ref_q, atol=1e-5, rtol=1e-5))

    ne_ref_f = jnp.mean(_energy_ref(rbm.pcd_state, rbm.b, rbm.W))
    lp_ref_f = -(jnp.mean(e_ref_f, axis=-1) - ne_ref_f)
    assert bool(jnp.allclose(lp, lp_ref_f, atol=2e-2, rtol=2e-2))

    print("KERNEL_OK")
</pallas_src>

<mosaic_0001>
module attributes {stable_mosaic.version = 11 : i64} {
  func.func @_identity_kernel(%arg0: i32, %arg1: memref<8x32xf32, #tpu.memory_space<vmem>>, %arg2: memref<8x32xf32, #tpu.memory_space<vmem>>) attributes {dimension_semantics = [#tpu.dimension_semantics<parallel>], iteration_bounds = array<i64: 1>, scalar_prefetch = 0 : i64, scratch_operands = 0 : i64, tpu.core_type = #tpu.core_type<tc>, window_params = [{transform_indices = @transform_0, window_bounds = array<i64: 8, 32>}, {transform_indices = @transform_1, window_bounds = array<i64: 8, 32>}]} {
    %c0 = arith.constant 0 : index
    %c0_0 = arith.constant 0 : index
    %0 = vector.load %arg1[%c0, %c0_0] : memref<8x32xf32, #tpu.memory_space<vmem>>, vector<8x32xf32>
    %c0_1 = arith.constant 0 : index
    %c0_2 = arith.constant 0 : index
    %1 = vector.load %arg2[%c0_1, %c0_2] : memref<8x32xf32, #tpu.memory_space<vmem>>, vector<8x32xf32>
    tpu.vector_store %arg2[%c0_1, %c0_2], %0 {strides = array<i32>} : memref<8x32xf32, #tpu.memory_space<vmem>>, vector<8x32xf32>,
    return
  }
  func.func @transform_0(%arg0: i32) -> (i32, i32) {
    %c0_i32 = arith.constant 0 : i32
    %c0_i32_0 = arith.constant 0 : i32
    return %arg0, %c0_i32 : i32, i32
  }
  func.func @transform_1(%arg0: i32) -> (i32, i32) {
    %c0_i32 = arith.constant 0 : i32
    %c0_i32_0 = arith.constant 0 : i32
    return %arg0, %c0_i32 : i32, i32
  }
}

</mosaic_0001>

<llo_original>
// kernel: rbm_forward.1
$region0: #{rbm_forward.1}
  #allocation0 [shape = 'u32[]', space=smem, size = 0x4, offset = 0x4, fixed_abs, tag = 'smem constant byte address 0x4 - core index']
  #allocation1 [shape = 'u32[144,128]{1,0:T(1,128)}', space=vmem, size = 0x12000, scoped, tag = 'internal scratch']
  %s0 = inlined_call_operand.hbm [shape: f32[8,32], index: 0, kind: input, shape index: {}]
  %s1 = inlined_call_operand.hbm [shape: f32[8,32], index: 1, kind: output, shape index: {}]
  %s2 = sld [smem:[#allocation0]]
  $region18: #{rbm_forward.1} parent=0
    _
  %s4 = ssub.s32 1, %s2
  %s5 = scalar_select 0, %s4, %s2
  $region1: #{rbm_forward.1} parent=0
    #allocation2 [shape = 'u8[4096]{0}', space=vmem, size = 0x1000, scoped, tag = 'input window, operand 0, single buffered']
    #allocation3 [shape = 's32[1]{0}', space=sflag, size = 0x4, scoped, tag = 'scoped memory for rbm_forward.1']
    #allocation4 [shape = 's32[1]{0}', space=sflag, size = 0x4, scoped, tag = 'scoped memory for rbm_forward.1']
    #allocation5 [shape = 'u8[4096]{0}', space=vmem, size = 0x1000, scoped, tag = 'output window, operand 0, single buffered']
    %6 = vsyncpa [#allocation3], 0
    %7 = vsyncpa [#allocation4], 0
    // Predicated region
    $region2: #{rbm_forward.1} parent=1 // pred_check
      _
    $region3: #{rbm_forward.1} parent=1 // pred_check_branch
      %9 = sbr.rel (0) target = $region5
    $region4: #{rbm_forward.1} parent=1 // pred_region
      %s11 = ssub.s32 128, 128
      %12 = vsyncadd [#allocation3], %s11
      %s14 = sshll.u32 [#allocation2], 4
      %s15 = int_to_ptr.vmem [resolvable:$true] %s14
      %17 = dma.hbm_to_vmem [thread:$0]  %s0, 128, %s15, [#allocation3]
    $region5: #{rbm_forward.1} parent=1 // pred_fallthru
      _
    // Predicated region
    $region6: #{rbm_forward.1} parent=1 // pred_check
      _
    $region7: #{rbm_forward.1} parent=1 // pred_check_branch
      %19 = sbr.rel (0) target = $region9
    $region8: #{rbm_forward.1} parent=1 // pred_region
      %20 = dma.done [#allocation3], 128
    $region9: #{rbm_forward.1} parent=1 // pred_fallthru
      _
    %v21 = vld [vmem:[#allocation2] sm:$0xff]
    %vm22 = vcmask 261120
    %23 = vst.msk [vmem:[#allocation5] sm:$0xff] %vm22, %v21
    // Predicated region
    $region10: #{rbm_forward.1} parent=1 // pred_check
      _
    $region11: #{rbm_forward.1} parent=1 // pred_check_branch
      %25 = sbr.rel (0) target = $region13
    $region12: #{rbm_forward.1} parent=1 // pred_region
      %s27 = ssub.s32 128, 128
      %28 = vsyncadd [#allocation4], %s27
      %s30 = sshll.u32 [#allocation5], 4
      %s31 = int_to_ptr.vmem [resolvable:$true] %s30
      %33 = dma.vmem_to_hbm [thread:$0]  %s31, 128, %s1, [#allocation4]
    $region13: #{rbm_forward.1} parent=1 // pred_fallthru
      _
    // Predicated region
    $region14: #{rbm_forward.1} parent=1 // pred_check
      _
    $region15: #{rbm_forward.1} parent=1 // pred_check_branch
      %35 = sbr.rel (0) target = $region17
    $region16: #{rbm_forward.1} parent=1 // pred_region
      %36 = dma.done [#allocation4], 128
    $region17: #{rbm_forward.1} parent=1 // pred_fallthru
      _
    %37 = vsyncpa [#allocation3], 1
    %38 = vsyncpa [#allocation4], 1

</llo_original>
